<compile_context>
chip_gen: v6e
topology: v6e:2x2x1
jax: 0.10.0
libtpu: 0.0.40
codegen_flags: <defaults>
</compile_context>

<pallas_src>
import functools
import numpy as np

import jax
import jax.numpy as jnp
from jax import lax
from jax.experimental import pallas as pl
from jax.experimental.pallas import tpu as pltpu


_LANES = 512        # lane width of elementwise tiles (multiple of 128)
_BLOCK_ROWS = 64    # sublane rows per grid step (multiple of 8)


def _round_up(v, m):
    return ((v + m - 1) // m) * m


def _pack_2d(v):
    """1-D (N,) -> zero-padded (Rp, _LANES) f32, Rp a multiple of _BLOCK_ROWS."""
    n = v.shape[0]
    rows = -(-n // _LANES)
    rp = _round_up(max(rows, 1), _BLOCK_ROWS)
    vp = jnp.pad(v.astype(jnp.float32), (0, rp * _LANES - n))
    return vp.reshape(rp, _LANES)


def _unpack_2d(m, n):
    return m.reshape(-1)[:n]


# ---------------------------------------------------------------------------
# Pallas kernel 1: compressor static gain computer (elementwise).
#   x_G = clip(20*log10(|x| + 1e-8), -96)
#   y_G = soft-knee static curve(x_G; threshold, ratio, knee)
#   x_L = x_G - y_G          (gain reduction in dB, before ballistics)
# The threshold changes every while-loop step -> traced scalar in SMEM.
# ---------------------------------------------------------------------------
def _comp_static_kernel(thr_ref, x_ref, xl_ref, *, ratio, knee_db):
    thr = thr_ref[0]
    xv = x_ref[...]
    x_g = 20.0 * jnp.log10(jnp.abs(xv) + 1e-8)
    x_g = jnp.maximum(x_g, -96.0)
    diff = x_g - thr
    below = (2.0 * diff) < -knee_db
    above = (2.0 * diff) > knee_db
    y_knee = x_g + ((1.0 / ratio) - 1.0) * jnp.square(diff + knee_db * 0.5) / (2.0 * knee_db)
    y_above = thr + diff / ratio
    y_g = jnp.where(above, y_above, jnp.where(below, x_g, y_knee))
    xl_ref[...] = x_g - y_g


def compressor_static_gain(x1d, threshold, *, ratio, knee_db):
    n = x1d.shape[0]
    xm = _pack_2d(x1d)
    rp, c = xm.shape
    kern = functools.partial(_comp_static_kernel, ratio=float(ratio), knee_db=float(knee_db))
    xl = pl.pallas_call(
        kern,
        out_shape=jax.ShapeDtypeStruct((rp, c), jnp.float32),
        grid=(rp // _BLOCK_ROWS,),
        in_specs=[
            pl.BlockSpec(memory_space=pltpu.MemorySpace.SMEM),       # threshold scalar
            pl.BlockSpec((_BLOCK_ROWS, c), lambda i: (i, 0)),
        ],
        out_specs=pl.BlockSpec((_BLOCK_ROWS, c), lambda i: (i, 0)),
        compiler_params=pltpu.CompilerParams(dimension_semantics=("parallel",)),
    )(jnp.reshape(threshold, (1,)).astype(jnp.float32), xm)
    return _unpack_2d(xl, n)


# ---------------------------------------------------------------------------
# Pallas kernel 2: gain application  y = x * 10 ** ((makeup - y_L) / 20).
# ---------------------------------------------------------------------------
def _comp_gain_kernel(x_ref, yl_ref, o_ref, *, makeup_db):
    ln10_over_20 = float(np.log(10.0) / 20.0)
    o_ref[...] = x_ref[...] * jnp.exp(ln10_over_20 * (makeup_db - yl_ref[...]))


def compressor_gain_apply(x1d, yl1d, *, makeup_db):
    n = x1d.shape[0]
    xm = _pack_2d(x1d)
    ylm = _pack_2d(yl1d)
    rp, c = xm.shape
    kern = functools.partial(_comp_gain_kernel, makeup_db=float(makeup_db))
    y = pl.pallas_call(
        kern,
        out_shape=jax.ShapeDtypeStruct((rp, c), jnp.float32),
        grid=(rp // _BLOCK_ROWS,),
        in_specs=[
            pl.BlockSpec((_BLOCK_ROWS, c), lambda i: (i, 0)),
            pl.BlockSpec((_BLOCK_ROWS, c), lambda i: (i, 0)),
        ],
        out_specs=pl.BlockSpec((_BLOCK_ROWS, c), lambda i: (i, 0)),
        compiler_params=pltpu.CompilerParams(dimension_semantics=("parallel",)),
    )(xm, ylm)
    return _unpack_2d(y, n)


# ---------------------------------------------------------------------------
# Pallas kernel 3: per-segment sum of squares for the loudness gating blocks.
# ---------------------------------------------------------------------------
def _seg_energy_kernel(x_ref, o_ref):
    xv = x_ref[...]
    o_ref[...] = jnp.sum(xv * xv, axis=1, keepdims=True)


def segment_energies(seg):
    s, h = seg.shape
    sp = _round_up(s, 8)
    hp = _round_up(h, 128)
    segp = jnp.pad(seg.astype(jnp.float32), ((0, sp - s), (0, hp - h)))
    e = pl.pallas_call(
        _seg_energy_kernel,
        out_shape=jax.ShapeDtypeStruct((sp, 1), jnp.float32),
        grid=(sp // 8,),
        in_specs=[pl.BlockSpec((8, hp), lambda i: (i, 0))],
        out_specs=pl.BlockSpec((8, 1), lambda i: (i, 0)),
        compiler_params=pltpu.CompilerParams(dimension_semantics=("parallel",)),
    )(segp)
    return e[:s, 0]


# ---------------------------------------------------------------------------
# pyloudnorm K-weighting (ITU-R BS.1770): +4 dB high shelf @ 1.5 kHz and a
# high-pass @ 38 Hz, parametrized for arbitrary fs (filter design is glue).
# ---------------------------------------------------------------------------
def _k_weighting_coeffs(rate):
    def biquad(G, Q, fc, ftype):
        A = 10.0 ** (G / 40.0)
        w0 = 2.0 * np.pi * (fc / rate)
        alpha = np.sin(w0) / (2.0 * Q)
        cw = np.cos(w0)
        if ftype == "high_shelf":
            b0 = A * ((A + 1) + (A - 1) * cw + 2 * np.sqrt(A) * alpha)
            b1 = -2 * A * ((A - 1) + (A + 1) * cw)
            b2 = A * ((A + 1) + (A - 1) * cw - 2 * np.sqrt(A) * alpha)
            a0 = (A + 1) - (A - 1) * cw + 2 * np.sqrt(A) * alpha
            a1 = 2 * ((A - 1) - (A + 1) * cw)
            a2 = (A + 1) - (A - 1) * cw - 2 * np.sqrt(A) * alpha
        else:  # high_pass
            b0 = (1 + cw) / 2.0
            b1 = -(1 + cw)
            b2 = (1 + cw) / 2.0
            a0 = 1 + alpha
            a1 = -2 * cw
            a2 = 1 - alpha
        b = tuple(float(v / a0) for v in (b0, b1, b2))
        a = (1.0, float(a1 / a0), float(a2 / a0))
        return b, a

    return (biquad(4.0, 1.0 / np.sqrt(2.0), 1500.0, "high_shelf"),
            biquad(0.0, 0.5, 38.0, "high_pass"))


def _k_weight(x, coeffs):
    """Cascade of two biquads (scipy.signal.lfilter, zero init), DF2-transposed."""
    # TODO(synk): IIR recursion is sample-sequential; kept as lax.scan, not Pallas.
    (b1, a1), (b2, a2) = coeffs

    def step(carry, xn):
        z11, z12, z21, z22 = carry
        y1 = b1[0] * xn + z11
        z11n = b1[1] * xn - a1[1] * y1 + z12
        z12n = b1[2] * xn - a1[2] * y1
        y2 = b2[0] * y1 + z21
        z21n = b2[1] * y1 - a2[1] * y2 + z22
        z22n = b2[2] * y1 - a2[2] * y2
        return (z11n, z12n, z21n, z22n), y2

    zero = jnp.zeros((), jnp.float32)
    _, yk = lax.scan(step, (zero, zero, zero, zero), x.astype(jnp.float32), unroll=8)
    return yk


def integrated_loudness(data1d, rate, coeffs):
    """pyloudnorm Meter.integrated_loudness for a mono signal (gated LUFS)."""
    n = data1d.shape[0]
    t_g, overlap = 0.400, 0.75
    step = 1.0 - overlap
    block_n = int(t_g * rate)
    hop = int(t_g * step * rate)
    assert n >= block_n, "signal must be at least one 400 ms gating block long"
    assert block_n == 4 * hop, "sample rate must give integer 100 ms hops"
    num_blocks = int(round(((n / rate) - t_g) / (t_g * step))) + 1

    xk = _k_weight(data1d, coeffs)

    # 400 ms blocks with 75% overlap share 100 ms hop segments: sum squares per
    # segment (Pallas) and add 4 adjacent segment energies per block.
    num_segs = num_blocks + 3
    target = num_segs * hop
    xk = jnp.pad(xk, (0, target - n)) if target >= n else xk[:target]
    e = segment_energies(xk.reshape(num_segs, hop))
    z = (e[0:num_blocks] + e[1:num_blocks + 1]
         + e[2:num_blocks + 2] + e[3:num_blocks + 3]) / float(block_n)

    l = -0.691 + 10.0 * jnp.log10(z)
    gamma_a = -70.0
    mask_a = l >= gamma_a
    cnt_a = jnp.maximum(jnp.sum(mask_a.astype(jnp.float32)), 1.0)
    z_avg_a = jnp.sum(jnp.where(mask_a, z, 0.0)) / cnt_a
    gamma_r = -0.691 + 10.0 * jnp.log10(z_avg_a) - 10.0
    mask_r = jnp.logical_and(l > gamma_r, l > gamma_a)
    cnt_r = jnp.maximum(jnp.sum(mask_r.astype(jnp.float32)), 1.0)
    z_avg_r = jnp.sum(jnp.where(mask_r, z, 0.0)) / cnt_r
    return -0.691 + 10.0 * jnp.log10(z_avg_r)


# ---------------------------------------------------------------------------
# deepafx_st dsp compressor: feed-forward, soft knee, branch attack/release.
# ---------------------------------------------------------------------------
def compressor(x1d, threshold, *, sample_rate, ratio=3.0, attack_time=0.001,
               release_time=0.05, knee_db=6.0, makeup_gain_db=0.0):
    alpha_a = float(np.exp(-np.log(9.0) / (sample_rate * attack_time)))
    alpha_r = float(np.exp(-np.log(9.0) / (sample_rate * release_time)))

    x_l = compressor_static_gain(x1d, threshold, ratio=ratio, knee_db=knee_db)

    # Attack/release smoothing: y_L[n] depends on y_L[n-1] through a
    # data-dependent branch -> inherently sequential.
    # TODO(synk): ballistics recursion has no parallel Pallas equivalent.
    def step(y_prev, xn):
        alpha = jnp.where(xn > y_prev, alpha_a, alpha_r)
        y = alpha * y_prev + (1.0 - alpha) * xn
        return y, y

    _, y_tail = lax.scan(step, jnp.zeros((), jnp.float32), x_l[1:], unroll=8)
    y_l = jnp.concatenate([jnp.zeros((1,), jnp.float32), y_tail])

    return compressor_gain_apply(x1d, y_l, makeup_db=makeup_gain_db)


# ---------------------------------------------------------------------------
# BaslineComp.forward
# ---------------------------------------------------------------------------
def basline_comp_forward(x, y, *, sample_rate):
    n = int(np.prod(x.shape))
    x_flat = x.reshape(-1).astype(jnp.float32)
    y_flat = y.reshape(-1).astype(jnp.float32)
    coeffs = _k_weighting_coeffs(sample_rate)

    x_lufs = integrated_loudness(x_flat, sample_rate, coeffs)
    y_lufs = integrated_loudness(y_flat, sample_rate, coeffs)

    norm_gain = float(10.0 ** (-12.0 / 20.0))

    def cond(carry):
        thr, delta, _, _ = carry
        return jnp.logical_and(delta > 0.5, thr > -80.0)

    def body(carry):
        thr, _, _, x_comp_new = carry
        x_comp = x_comp_new
        xc = compressor(x_flat, thr, sample_rate=sample_rate, ratio=3.0,
                        attack_time=0.001, release_time=0.05,
                        knee_db=6.0, makeup_gain_db=0.0)
        xc = xc / jnp.max(jnp.abs(xc))
        xc = xc * norm_gain
        x_lufs_new = integrated_loudness(xc, sample_rate, coeffs)
        delta = y_lufs - x_lufs_new
        return (thr - 0.5, delta, x_comp, xc)

    init = (jnp.zeros((), jnp.float32), y_lufs - x_lufs, x_flat, x_flat)
    _, _, x_comp, _ = lax.while_loop(cond, body, init)
    return x_comp.reshape(1, 1, n)


# ---------------------------------------------------------------------------
# NumPy reference (mirrors pyloudnorm + the deepafx_st compressor) for checks.
# ---------------------------------------------------------------------------
def _np_biquad(b, a, x):
    y = np.zeros_like(x)
    z1 = 0.0
    z2 = 0.0
    for i in range(len(x)):
        y[i] = b[0] * x[i] + z1
        z1 = b[1] * x[i] - a[1] * y[i] + z2
        z2 = b[2] * x[i] - a[2] * y[i]
    return y


def _np_integrated_loudness(x, rate):
    d = x.astype(np.float64).copy()
    for b, a in _k_weighting_coeffs(rate):
        d = _np_biquad(np.array(b), np.array(a), d)
    t_g, step = 0.400, 0.25
    n = len(d)
    nb = int(round(((n / rate) - t_g) / (t_g * step))) + 1
    z = np.zeros(nb)
    for j in range(nb):
        lo = int(t_g * (j * step) * rate)
        hi = int(t_g * (j * step + 1) * rate)
        z[j] = np.sum(np.square(d[lo:hi])) / (t_g * rate)
    l = -0.691 + 10.0 * np.log10(z)
    ja = [j for j in range(nb) if l[j] >= -70.0]
    z_a = np.mean(z[ja]) if ja else 0.0
    g_r = -0.691 + 10.0 * np.log10(z_a) - 10.0
    jr = [j for j in range(nb) if l[j] > g_r and l[j] > -70.0]
    z_r = np.mean(z[jr]) if jr else 0.0
    return -0.691 + 10.0 * np.log10(z_r)


def _np_compressor(x, sr, threshold, ratio=3.0, attack=0.001, release=0.05,
                   knee=6.0, makeup=0.0):
    x = x.astype(np.float64)
    n = len(x)
    a_a = np.exp(-np.log(9.0) / (sr * attack))
    a_r = np.exp(-np.log(9.0) / (sr * release))
    x_g = np.maximum(20.0 * np.log10(np.abs(x) + 1e-8), -96.0)
    y_g = np.zeros(n)
    below = 2.0 * (x_g - threshold) < -knee
    at = 2.0 * np.abs(x_g - threshold) <= knee
    above = 2.0 * (x_g - threshold) > knee
    y_g[below] = x_g[below]
    y_g[at] = x_g[at] + ((1.0 / ratio) - 1.0) * np.square(x_g[at] - threshold + knee / 2.0) / (2.0 * knee)
    y_g[above] = threshold + (x_g[above] - threshold) / ratio
    x_l = x_g - y_g
    y_l = np.zeros(n)
    for i in range(1, n):
        if x_l[i] > y_l[i - 1]:
            y_l[i] = a_a * y_l[i - 1] + (1.0 - a_a) * x_l[i]
        else:
            y_l[i] = a_r * y_l[i - 1] + (1.0 - a_r) * x_l[i]
    return x * np.power(10.0, (makeup - y_l) / 20.0)


def _np_forward(x, y, sr):
    xf = np.asarray(x, np.float64).reshape(-1)
    yf = np.asarray(y, np.float64).reshape(-1)
    x_lufs = _np_integrated_loudness(xf, sr)
    y_lufs = _np_integrated_loudness(yf, sr)
    delta = y_lufs - x_lufs
    thr = 0.0
    x_comp = xf
    x_comp_new = xf
    while delta > 0.5 and thr > -80.0:
        x_comp = x_comp_new
        x_comp_new = _np_compressor(xf, sr, thr)
        x_comp_new = x_comp_new / np.max(np.abs(x_comp_new))
        x_comp_new = x_comp_new * (10.0 ** (-12.0 / 20.0))
        x_lufs = _np_integrated_loudness(x_comp_new, sr)
        delta = y_lufs - x_lufs
        thr -= 0.5
    return x_comp.reshape(1, 1, -1)


if __name__ == "__main__":
    sample_rate = 16000.0
    bs, ch, s = 1, 1, 8000            # >= one 400 ms loudness gating block

    key = jax.random.PRNGKey(0)
    kx, ky = jax.random.split(key)
    x = 0.01 * jax.random.normal(kx, (bs, ch, s), dtype=jnp.float32)
    y = 0.03 * jax.random.normal(ky, (bs, ch, s), dtype=jnp.float32)

    fwd = jax.jit(functools.partial(basline_comp_forward, sample_rate=sample_rate))
    out = jax.block_until_ready(fwd(x, y))

    # Sanity checks against the NumPy reference.
    x_np = np.asarray(x).reshape(-1)
    y_np = np.asarray(y).reshape(-1)
    coeffs = _k_weighting_coeffs(sample_rate)

    loud = jax.jit(lambda v: integrated_loudness(v, sample_rate, coeffs))
    assert abs(float(loud(x.reshape(-1))) - _np_integrated_loudness(x_np, sample_rate)) < 2e-2
    assert abs(float(loud(y.reshape(-1))) - _np_integrated_loudness(y_np, sample_rate)) < 2e-2

    comp = jax.jit(lambda v, t: compressor(v, t, sample_rate=sample_rate))
    got = np.asarray(comp(x.reshape(-1), jnp.float32(-40.0)))
    want = _np_compressor(x_np, sample_rate, -40.0)
    np.testing.assert_allclose(got, want, rtol=5e-4, atol=1e-5)

    ref = _np_forward(np.asarray(x), np.asarray(y), sample_rate)
    np.testing.assert_allclose(np.asarray(out), ref.astype(np.float32), rtol=1e-5, atol=1e-6)

    print("KERNEL_OK")
</pallas_src>

<mosaic_0001>
module attributes {stable_mosaic.version = 11 : i64} {
  func.func @_seg_energy_kernel(%arg0: i32, %arg1: memref<8x1664xf32, #tpu.memory_space<vmem>>, %arg2: memref<8x1xf32, #tpu.memory_space<vmem>>) attributes {dimension_semantics = [#tpu.dimension_semantics<parallel>], iteration_bounds = array<i64: 1>, scalar_prefetch = 0 : i64, scratch_operands = 0 : i64, tpu.core_type = #tpu.core_type<tc>, window_params = [{transform_indices = @transform_0, window_bounds = array<i64: 8, 1664>}, {transform_indices = @transform_1, window_bounds = array<i64: 8, 1>}]} {
    %c0 = arith.constant 0 : index
    %c0_0 = arith.constant 0 : index
    %0 = vector.load %arg1[%c0, %c0_0] : memref<8x1664xf32, #tpu.memory_space<vmem>>, vector<8x1664xf32>
    %1 = arith.mulf %0, %0 : vector<8x1664xf32>
    %cst = arith.constant dense<0.000000e+00> : vector<8xf32>
    %2 = vector.multi_reduction <add>, %1, %cst [1] : vector<8x1664xf32> to vector<8xf32>
    %3 = vector.shape_cast %2 : vector<8xf32> to vector<8x1xf32>
    %c0_1 = arith.constant 0 : index
    %c0_2 = arith.constant 0 : index
    %4 = vector.load %arg2[%c0_1, %c0_2] : memref<8x1xf32, #tpu.memory_space<vmem>>, vector<8x1xf32>
    tpu.vector_store %arg2[%c0_1, %c0_2], %3 {strides = array<i32>} : memref<8x1xf32, #tpu.memory_space<vmem>>, vector<8x1xf32>,
    return
  }
  func.func @transform_0(%arg0: i32) -> (i32, i32) {
    %c0_i32 = arith.constant 0 : i32
    %c0_i32_0 = arith.constant 0 : i32
    return %arg0, %c0_i32 : i32, i32
  }
  func.func @transform_1(%arg0: i32) -> (i32, i32) {
    %c0_i32 = arith.constant 0 : i32
    %c0_i32_0 = arith.constant 0 : i32
    return %arg0, %c0_i32 : i32, i32
  }
}

module attributes {stable_mosaic.version = 11 : i64} {
  func.func @_comp_static_kernel(%arg0: i32, %arg1: memref<1xf32, #tpu.memory_space<smem>>, %arg2: memref<64x512xf32, #tpu.memory_space<vmem>>, %arg3: memref<64x512xf32, #tpu.memory_space<vmem>>) attributes {dimension_semantics = [#tpu.dimension_semantics<parallel>], iteration_bounds = array<i64: 1>, scalar_prefetch = 0 : i64, scratch_operands = 0 : i64, tpu.core_type = #tpu.core_type<tc>, window_params = [{transform_indices = @transform_0, window_bounds = array<i64: 1>}, {transform_indices = @transform_1, window_bounds = array<i64: 64, 512>}, {transform_indices = @transform_2, window_bounds = array<i64: 64, 512>}]} {
    %c0 = arith.constant 0 : index
    %0 = memref.load %arg1[%c0] : memref<1xf32, #tpu.memory_space<smem>>
    %c0_0 = arith.constant 0 : index
    %c0_1 = arith.constant 0 : index
    %1 = vector.load %arg2[%c0_0, %c0_1] : memref<64x512xf32, #tpu.memory_space<vmem>>, vector<64x512xf32>
    %2 = math.absf %1 : vector<64x512xf32>
    %cst = arith.constant 9.99999993E-9 : f32
    %3 = vector.broadcast %cst : f32 to vector<64x512xf32>
    %4 = arith.addf %2, %3 : vector<64x512xf32>
    %5 = math.log %4 : vector<64x512xf32>
    %cst_2 = arith.constant 0.434294492 : f32
    %6 = vector.broadcast %cst_2 : f32 to vector<64x512xf32>
    %7 = arith.mulf %5, %6 : vector<64x512xf32>
    %cst_3 = arith.constant 2.000000e+01 : f32
    %8 = vector.broadcast %cst_3 : f32 to vector<64x512xf32>
    %9 = arith.mulf %8, %7 : vector<64x512xf32>
    %cst_4 = arith.constant -9.600000e+01 : f32
    %10 = vector.broadcast %cst_4 : f32 to vector<64x512xf32>
    %11 = arith.maximumf %9, %10 : vector<64x512xf32>
    %12 = vector.broadcast %0 : f32 to vector<64x512xf32>
    %13 = arith.subf %11, %12 : vector<64x512xf32>
    %cst_5 = arith.constant 2.000000e+00 : f32
    %14 = vector.broadcast %cst_5 : f32 to vector<64x512xf32>
    %15 = arith.mulf %14, %13 : vector<64x512xf32>
    %cst_6 = arith.constant -6.000000e+00 : f32
    %16 = vector.broadcast %cst_6 : f32 to vector<64x512xf32>
    %17 = arith.cmpf olt, %15, %16 : vector<64x512xf32>
    %cst_7 = arith.constant 2.000000e+00 : f32
    %18 = vector.broadcast %cst_7 : f32 to vector<64x512xf32>
    %19 = arith.mulf %18, %13 : vector<64x512xf32>
    %cst_8 = arith.constant 6.000000e+00 : f32
    %20 = vector.broadcast %cst_8 : f32 to vector<64x512xf32>
    %21 = arith.cmpf ogt, %19, %20 : vector<64x512xf32>
    %cst_9 = arith.constant 3.000000e+00 : f32
    %22 = vector.broadcast %cst_9 : f32 to vector<64x512xf32>
    %23 = arith.addf %13, %22 : vector<64x512xf32>
    %24 = arith.mulf %23, %23 : vector<64x512xf32>
    %cst_10 = arith.constant -0.666666686 : f32
    %25 = vector.broadcast %cst_10 : f32 to vector<64x512xf32>
    %26 = arith.mulf %25, %24 : vector<64x512xf32>
    %cst_11 = arith.constant 1.200000e+01 : f32
    %27 = vector.broadcast %cst_11 : f32 to vector<64x512xf32>
    %28 = arith.divf %26, %27 : vector<64x512xf32>
    %29 = arith.addf %11, %28 : vector<64x512xf32>
    %cst_12 = arith.constant 3.000000e+00 : f32
    %30 = vector.broadcast %cst_12 : f32 to vector<64x512xf32>
    %31 = arith.divf %13, %30 : vector<64x512xf32>
    %32 = vector.broadcast %0 : f32 to vector<64x512xf32>
    %33 = arith.addf %32, %31 : vector<64x512xf32>
    %34 = arith.select %17, %11, %29 : vector<64x512xi1>, vector<64x512xf32>
    %35 = arith.select %21, %33, %34 : vector<64x512xi1>, vector<64x512xf32>
    %36 = arith.subf %11, %35 : vector<64x512xf32>
    %c0_13 = arith.constant 0 : index
    %c0_14 = arith.constant 0 : index
    %37 = vector.load %arg3[%c0_13, %c0_14] : memref<64x512xf32, #tpu.memory_space<vmem>>, vector<64x512xf32>
    tpu.vector_store %arg3[%c0_13, %c0_14], %36 {strides = array<i32>} : memref<64x512xf32, #tpu.memory_space<vmem>>, vector<64x512xf32>,
    return
  }
  func.func @transform_0(%arg0: i32) -> i32 {
    %c0_i32 = arith.constant 0 : i32
    %c0_i32_0 = arith.constant 0 : i32
    return %c0_i32 : i32
  }
  func.func @transform_1(%arg0: i32) -> (i32, i32) {
    %c0_i32 = arith.constant 0 : i32
    %c0_i32_0 = arith.constant 0 : i32
    return %arg0, %c0_i32 : i32, i32
  }
  func.func @transform_2(%arg0: i32) -> (i32, i32) {
    %c0_i32 = arith.constant 0 : i32
    %c0_i32_0 = arith.constant 0 : i32
    return %arg0, %c0_i32 : i32, i32
  }
}

module attributes {stable_mosaic.version = 11 : i64} {
  func.func @_comp_gain_kernel(%arg0: i32, %arg1: memref<64x512xf32, #tpu.memory_space<vmem>>, %arg2: memref<64x512xf32, #tpu.memory_space<vmem>>, %arg3: memref<64x512xf32, #tpu.memory_space<vmem>>) attributes {dimension_semantics = [#tpu.dimension_semantics<parallel>], iteration_bounds = array<i64: 1>, scalar_prefetch = 0 : i64, scratch_operands = 0 : i64, tpu.core_type = #tpu.core_type<tc>, window_params = [{transform_indices = @transform_0, window_bounds = array<i64: 64, 512>}, {transform_indices = @transform_1, window_bounds = array<i64: 64, 512>}, {transform_indices = @transform_2, window_bounds = array<i64: 64, 512>}]} {
    %c0 = arith.constant 0 : index
    %c0_0 = arith.constant 0 : index
    %0 = vector.load %arg1[%c0, %c0_0] : memref<64x512xf32, #tpu.memory_space<vmem>>, vector<64x512xf32>
    %c0_1 = arith.constant 0 : index
    %c0_2 = arith.constant 0 : index
    %1 = vector.load %arg2[%c0_1, %c0_2] : memref<64x512xf32, #tpu.memory_space<vmem>>, vector<64x512xf32>
    %cst = arith.constant 0.000000e+00 : f32
    %2 = vector.broadcast %cst : f32 to vector<64x512xf32>
    %3 = arith.subf %2, %1 : vector<64x512xf32>
    %cst_3 = arith.constant 0.115129255 : f32
    %4 = vector.broadcast %cst_3 : f32 to vector<64x512xf32>
    %5 = arith.mulf %4, %3 : vector<64x512xf32>
    %6 = math.exp %5 : vector<64x512xf32>
    %7 = arith.mulf %0, %6 : vector<64x512xf32>
    %c0_4 = arith.constant 0 : index
    %c0_5 = arith.constant 0 : index
    %8 = vector.load %arg3[%c0_4, %c0_5] : memref<64x512xf32, #tpu.memory_space<vmem>>, vector<64x512xf32>
    tpu.vector_store %arg3[%c0_4, %c0_5], %7 {strides = array<i32>} : memref<64x512xf32, #tpu.memory_space<vmem>>, vector<64x512xf32>,
    return
  }
  func.func @transform_0(%arg0: i32) -> (i32, i32) {
    %c0_i32 = arith.constant 0 : i32
    %c0_i32_0 = arith.constant 0 : i32
    return %arg0, %c0_i32 : i32, i32
  }
  func.func @transform_1(%arg0: i32) -> (i32, i32) {
    %c0_i32 = arith.constant 0 : i32
    %c0_i32_0 = arith.constant 0 : i32
    return %arg0, %c0_i32 : i32, i32
  }
  func.func @transform_2(%arg0: i32) -> (i32, i32) {
    %c0_i32 = arith.constant 0 : i32
    %c0_i32_0 = arith.constant 0 : i32
    return %arg0, %c0_i32 : i32, i32
  }
}

</mosaic_0001>

<llo_original>
// kernel: basline_comp_forward.2
$region0: #{basline_comp_forward.2}
  #allocation0 [shape = 'u32[]', space=smem, size = 0x4, offset = 0x4, fixed_abs, tag = 'smem constant byte address 0x4 - core index']
  #allocation1 [shape = 'u32[144,128]{1,0:T(1,128)}', space=vmem, size = 0x12000, scoped, tag = 'internal scratch']
  %s0 = inlined_call_operand.vmem [shape: f32[8,1664], index: 0, kind: input, shape index: {}]
  %s1 = inlined_call_operand.vmem [shape: f32[8,1], index: 1, kind: output, shape index: {}]
  %s2 = sld [smem:[#allocation0]]
  $region14: #{basline_comp_forward.2} parent=0
    _
  %s4 = ssub.s32 1, %s2
  %s5 = scalar_select 0, %s4, %s2
  // Predicated region
  $region2: #{basline_comp_forward.2} parent=0 // pred_check
    _
  $region3: #{basline_comp_forward.2} parent=0 // pred_check_branch
    %7 = sbr.rel (0) target = $region5
  $region4: #{basline_comp_forward.2} parent=0 // pred_region
    _
  $region5: #{basline_comp_forward.2} parent=0 // pred_fallthru
    _
  %v8 = vld [vmem:[%s0] sm:$0xff]
  %v9 = vld [vmem:[%s0 + $0x8] sm:$0xff]
  %v10 = vld [vmem:[%s0 + $0x10] sm:$0xff]
  %v11 = vld [vmem:[%s0 + $0x18] sm:$0xff]
  %v12 = vld [vmem:[%s0 + $0x20] sm:$0xff]
  %v13 = vld [vmem:[%s0 + $0x28] sm:$0xff]
  %v14 = vld [vmem:[%s0 + $0x30] sm:$0xff]
  %v15 = vld [vmem:[%s0 + $0x38] sm:$0xff]
  %v16 = vld [vmem:[%s0 + $0x40] sm:$0xff]
  %v17 = vld [vmem:[%s0 + $0x48] sm:$0xff]
  %v18 = vld [vmem:[%s0 + $0x50] sm:$0xff]
  %v19 = vld [vmem:[%s0 + $0x58] sm:$0xff]
  %v20 = vld [vmem:[%s0 + $0x60] sm:$0xff]
  %v21 = vmul.f32 %v8, %v8
  %v22 = vmul.f32 %v9, %v9
  %v23 = vmul.f32 %v10, %v10
  %v24 = vmul.f32 %v11, %v11
  %v25 = vmul.f32 %v12, %v12
  %v26 = vmul.f32 %v13, %v13
  %v27 = vmul.f32 %v14, %v14
  %v28 = vmul.f32 %v15, %v15
  %v29 = vmul.f32 %v16, %v16
  %v30 = vmul.f32 %v17, %v17
  %v31 = vmul.f32 %v18, %v18
  %v32 = vmul.f32 %v19, %v19
  %v33 = vmul.f32 %v20, %v20
  %v34 = vadd.f32 %v21, %v22
  %v35 = vadd.f32 %v34, %v23
  %v36 = vadd.f32 %v35, %v24
  %v37 = vadd.f32 %v36, %v25
  %v38 = vadd.f32 %v37, %v26
  %v39 = vadd.f32 %v38, %v27
  %v40 = vadd.f32 %v39, %v28
  %v41 = vadd.f32 %v40, %v29
  %v42 = vadd.f32 %v41, %v30
  %v43 = vadd.f32 %v42, %v31
  %v44 = vadd.f32 %v43, %v32
  %v45 = vadd.f32 %v44, %v33
  %46 = vadd.xlane.f32.xlu0 %v45
  %v47 = vpop.xlane.xlu0 %46
  %vm48 = vcmask 7168
  %49 = vst.msk [vmem:[%s1] sm:$0xff] %vm48, %v47
  // Predicated region
  $region6: #{basline_comp_forward.2} parent=0 // pred_check
    _
  $region7: #{basline_comp_forward.2} parent=0 // pred_check_branch
    %51 = sbr.rel (0) target = $region9
  $region8: #{basline_comp_forward.2} parent=0 // pred_region
    _
  $region9: #{basline_comp_forward.2} parent=0 // pred_fallthru
    _
  // Predicated region
  $region10: #{basline_comp_forward.2} parent=0 // pred_check
    _
  $region11: #{basline_comp_forward.2} parent=0 // pred_check_branch
    %53 = sbr.rel (0) target = $region13
  $region12: #{basline_comp_forward.2} parent=0 // pred_region
    _
  $region13: #{basline_comp_forward.2} parent=0 // pred_fallthru
    _

// kernel: custom-call.5
$region0: #{custom-call.5}
  %s0 = inlined_call_operand.vmem [shape: f32[999,8], index: 0, kind: output, shape index: {}]

// kernel: body.30
$region0: #{body.30}
  #allocation0 [shape = 'u32[]', space=smem, size = 0x4, offset = 0x4, fixed_abs, tag = 'smem constant byte address 0x4 - core index']
  #allocation1 [shape = 'u32[144,128]{1,0:T(1,128)}', space=vmem, size = 0x12000, scoped, tag = 'internal scratch']
  #allocation2 [shape = 'f32[1]{0:T(128)S(6)}', space=smem, size = 0x200, scoped, tag = 'scoped memory for body.30']
  %s0 = inlined_call_operand.<no memory space> [shape: f32[1], index: 0, kind: input, shape index: {}]
  %s1 = inlined_call_operand.vmem [shape: f32[64,512], index: 1, kind: input, shape index: {}]
  %s2 = inlined_call_operand.vmem [shape: f32[64,512], index: 2, kind: output, shape index: {}]
  %s3 = sld [smem:[#allocation0]]
  $region18: #{body.30} parent=0
    _
  %s5 = ssub.s32 1, %s3
  %s6 = scalar_select 0, %s5, %s3
  %7 = sst [smem:[#allocation2]] %s0
  // Predicated region
  $region2: #{body.30} parent=0 // pred_check
    _
  $region3: #{body.30} parent=0 // pred_check_branch
    %9 = sbr.rel (0) target = $region5
  $region4: #{body.30} parent=0 // pred_region
    _
  $region5: #{body.30} parent=0 // pred_fallthru
    _
  // Predicated region
  $region6: #{body.30} parent=0 // pred_check
    _
  $region7: #{body.30} parent=0 // pred_check_branch
    %11 = sbr.rel (0) target = $region9
  $region8: #{body.30} parent=0 // pred_region
    _
  $region9: #{body.30} parent=0 // pred_fallthru
    _
  %s12 = sld [smem:[#allocation2]]
  %v13 = vld [vmem:[%s1] sm:$0xff]
  %v14 = vld [vmem:[%s1 + $0x8] sm:$0xff]
  %v15 = vld [vmem:[%s1 + $0x10] sm:$0xff]
  %v16 = vld [vmem:[%s1 + $0x18] sm:$0xff]
  %v17 = vld [vmem:[%s1 + $0x20] sm:$0xff]
  %v18 = vld [vmem:[%s1 + $0x28] sm:$0xff]
  %v19 = vld [vmem:[%s1 + $0x30] sm:$0xff]
  %v20 = vld [vmem:[%s1 + $0x38] sm:$0xff]
  %v21 = vld [vmem:[%s1 + $0x40] sm:$0xff]
  %v22 = vld [vmem:[%s1 + $0x48] sm:$0xff]
  %v23 = vld [vmem:[%s1 + $0x50] sm:$0xff]
  %v24 = vld [vmem:[%s1 + $0x58] sm:$0xff]
  %v25 = vld [vmem:[%s1 + $0x60] sm:$0xff]
  %v26 = vld [vmem:[%s1 + $0x68] sm:$0xff]
  %v27 = vld [vmem:[%s1 + $0x70] sm:$0xff]
  %v28 = vld [vmem:[%s1 + $0x78] sm:$0xff]
  %v29 = vld [vmem:[%s1 + $0x80] sm:$0xff]
  %v30 = vld [vmem:[%s1 + $0x88] sm:$0xff]
  %v31 = vld [vmem:[%s1 + $0x90] sm:$0xff]
  %v32 = vld [vmem:[%s1 + $0x98] sm:$0xff]
  %v33 = vld [vmem:[%s1 + $0xa0] sm:$0xff]
  %v34 = vld [vmem:[%s1 + $0xa8] sm:$0xff]
  %v35 = vld [vmem:[%s1 + $0xb0] sm:$0xff]
  %v36 = vld [vmem:[%s1 + $0xb8] sm:$0xff]
  %v37 = vld [vmem:[%s1 + $0xc0] sm:$0xff]
  %v38 = vld [vmem:[%s1 + $0xc8] sm:$0xff]
  %v39 = vld [vmem:[%s1 + $0xd0] sm:$0xff]
  %v40 = vld [vmem:[%s1 + $0xd8] sm:$0xff]
  %v41 = vld [vmem:[%s1 + $0xe0] sm:$0xff]
  %v42 = vld [vmem:[%s1 + $0xe8] sm:$0xff]
  %v43 = vld [vmem:[%s1 + $0xf0] sm:$0xff]
  %v44 = vld [vmem:[%s1 + $0xf8] sm:$0xff]
  %v45 = vand.u32 2147483647, %v13
  %v46 = vand.u32 2147483647, %v14
  %v47 = vand.u32 2147483647, %v15
  %v48 = vand.u32 2147483647, %v16
  %v49 = vand.u32 2147483647, %v17
  %v50 = vand.u32 2147483647, %v18
  %v51 = vand.u32 2147483647, %v19
  %v52 = vand.u32 2147483647, %v20
  %v53 = vand.u32 2147483647, %v21
  %v54 = vand.u32 2147483647, %v22
  %v55 = vand.u32 2147483647, %v23
  %v56 = vand.u32 2147483647, %v24
  %v57 = vand.u32 2147483647, %v25
  %v58 = vand.u32 2147483647, %v26
  %v59 = vand.u32 2147483647, %v27
  %v60 = vand.u32 2147483647, %v28
  %v61 = vand.u32 2147483647, %v29
  %v62 = vand.u32 2147483647, %v30
  %v63 = vand.u32 2147483647, %v31
  %v64 = vand.u32 2147483647, %v32
  %v65 = vand.u32 2147483647, %v33
  %v66 = vand.u32 2147483647, %v34
  %v67 = vand.u32 2147483647, %v35
  %v68 = vand.u32 2147483647, %v36
  %v69 = vand.u32 2147483647, %v37
  %v70 = vand.u32 2147483647, %v38
  %v71 = vand.u32 2147483647, %v39
  %v72 = vand.u32 2147483647, %v40
  %v73 = vand.u32 2147483647, %v41
  %v74 = vand.u32 2147483647, %v42
  %v75 = vand.u32 2147483647, %v43
  %v76 = vand.u32 2147483647, %v44
  %v77 = vadd.f32 %v45, 1e-08
  %v78 = vadd.f32 %v46, 1e-08
  %v79 = vadd.f32 %v47, 1e-08
  %v80 = vadd.f32 %v48, 1e-08
  %v81 = vadd.f32 %v49, 1e-08
  %v82 = vadd.f32 %v50, 1e-08
  %v83 = vadd.f32 %v51, 1e-08
  %v84 = vadd.f32 %v52, 1e-08
  %v85 = vadd.f32 %v53, 1e-08
  %v86 = vadd.f32 %v54, 1e-08
  %v87 = vadd.f32 %v55, 1e-08
  %v88 = vadd.f32 %v56, 1e-08
  %v89 = vadd.f32 %v57, 1e-08
  %v90 = vadd.f32 %v58, 1e-08
  %v91 = vadd.f32 %v59, 1e-08
  %v92 = vadd.f32 %v60, 1e-08
  %v93 = vadd.f32 %v61, 1e-08
  %v94 = vadd.f32 %v62, 1e-08
  %v95 = vadd.f32 %v63, 1e-08
  %v96 = vadd.f32 %v64, 1e-08
  %v97 = vadd.f32 %v65, 1e-08
  %v98 = vadd.f32 %v66, 1e-08
  %v99 = vadd.f32 %v67, 1e-08
  %v100 = vadd.f32 %v68, 1e-08
  %v101 = vadd.f32 %v69, 1e-08
  %v102 = vadd.f32 %v70, 1e-08
  %v103 = vadd.f32 %v71, 1e-08
  %v104 = vadd.f32 %v72, 1e-08
  %v105 = vadd.f32 %v73, 1e-08
  %v106 = vadd.f32 %v74, 1e-08
  %v107 = vadd.f32 %v75, 1e-08
  %v108 = vadd.f32 %v76, 1e-08
  %v109 = vlog2.pop %v77
  %v110 = vmul.f32 %v109, 0.6931472
  %v111 = vlog2.pop %v78
  %v112 = vmul.f32 %v111, 0.6931472
  %v113 = vlog2.pop %v79
  %v114 = vmul.f32 %v113, 0.6931472
  %v115 = vlog2.pop %v80
  %v116 = vmul.f32 %v115, 0.6931472
  %v117 = vlog2.pop %v81
  %v118 = vmul.f32 %v117, 0.6931472
  %v119 = vlog2.pop %v82
  %v120 = vmul.f32 %v119, 0.6931472
  %v121 = vlog2.pop %v83
  %v122 = vmul.f32 %v121, 0.6931472
  %v123 = vlog2.pop %v84
  %v124 = vmul.f32 %v123, 0.6931472
  %v125 = vlog2.pop %v85
  %v126 = vmul.f32 %v125, 0.6931472
  %v127 = vlog2.pop %v86
  %v128 = vmul.f32 %v127, 0.6931472
  %v129 = vlog2.pop %v87
  %v130 = vmul.f32 %v129, 0.6931472
  %v131 = vlog2.pop %v88
  %v132 = vmul.f32 %v131, 0.6931472
  %v133 = vlog2.pop %v89
  %v134 = vmul.f32 %v133, 0.6931472
  %v135 = vlog2.pop %v90
  %v136 = vmul.f32 %v135, 0.6931472
  %v137 = vlog2.pop %v91
  %v138 = vmul.f32 %v137, 0.6931472
  %v139 = vlog2.pop %v92
  %v140 = vmul.f32 %v139, 0.6931472
  %v141 = vlog2.pop %v93
  %v142 = vmul.f32 %v141, 0.6931472
  %v143 = vlog2.pop %v94
  %v144 = vmul.f32 %v143, 0.6931472
  %v145 = vlog2.pop %v95
  %v146 = vmul.f32 %v145, 0.6931472
  %v147 = vlog2.pop %v96
  %v148 = vmul.f32 %v147, 0.6931472
  %v149 = vlog2.pop %v97
  %v150 = vmul.f32 %v149, 0.6931472
  %v151 = vlog2.pop %v98
  %v152 = vmul.f32 %v151, 0.6931472
  %v153 = vlog2.pop %v99
  %v154 = vmul.f32 %v153, 0.6931472
  %v155 = vlog2.pop %v100
  %v156 = vmul.f32 %v155, 0.6931472
  %v157 = vlog2.pop %v101
  %v158 = vmul.f32 %v157, 0.6931472
  %v159 = vlog2.pop %v102
  %v160 = vmul.f32 %v159, 0.6931472
  %v161 = vlog2.pop %v103
  %v162 = vmul.f32 %v161, 0.6931472
  %v163 = vlog2.pop %v104
  %v164 = vmul.f32 %v163, 0.6931472
  %v165 = vlog2.pop %v105
  %v166 = vmul.f32 %v165, 0.6931472
  %v167 = vlog2.pop %v106
  %v168 = vmul.f32 %v167, 0.6931472
  %v169 = vlog2.pop %v107
  %v170 = vmul.f32 %v169, 0.6931472
  %v171 = vlog2.pop %v108
  %v172 = vmul.f32 %v171, 0.6931472
  %v173 = vmul.f32 %v110, 0.4342945
  %v174 = vmul.f32 %v112, 0.4342945
  %v175 = vmul.f32 %v114, 0.4342945
  %v176 = vmul.f32 %v116, 0.4342945
  %v177 = vmul.f32 %v118, 0.4342945
  %v178 = vmul.f32 %v120, 0.4342945
  %v179 = vmul.f32 %v122, 0.4342945
  %v180 = vmul.f32 %v124, 0.4342945
  %v181 = vmul.f32 %v126, 0.4342945
  %v182 = vmul.f32 %v128, 0.4342945
  %v183 = vmul.f32 %v130, 0.4342945
  %v184 = vmul.f32 %v132, 0.4342945
  %v185 = vmul.f32 %v134, 0.4342945
  %v186 = vmul.f32 %v136, 0.4342945
  %v187 = vmul.f32 %v138, 0.4342945
  %v188 = vmul.f32 %v140, 0.4342945
  %v189 = vmul.f32 %v142, 0.4342945
  %v190 = vmul.f32 %v144, 0.4342945
  %v191 = vmul.f32 %v146, 0.4342945
  %v192 = vmul.f32 %v148, 0.4342945
  %v193 = vmul.f32 %v150, 0.4342945
  %v194 = vmul.f32 %v152, 0.4342945
  %v195 = vmul.f32 %v154, 0.4342945
  %v196 = vmul.f32 %v156, 0.4342945
  %v197 = vmul.f32 %v158, 0.4342945
  %v198 = vmul.f32 %v160, 0.4342945
  %v199 = vmul.f32 %v162, 0.4342945
  %v200 = vmul.f32 %v164, 0.4342945
  %v201 = vmul.f32 %v166, 0.4342945
  %v202 = vmul.f32 %v168, 0.4342945
  %v203 = vmul.f32 %v170, 0.4342945
  %v204 = vmul.f32 %v172, 0.4342945
  %v205 = vmul.f32 %v173, 20.0
  %v206 = vmul.f32 %v174, 20.0
  %v207 = vmul.f32 %v175, 20.0
  %v208 = vmul.f32 %v176, 20.0
  %v209 = vmul.f32 %v177, 20.0
  %v210 = vmul.f32 %v178, 20.0
  %v211 = vmul.f32 %v179, 20.0
  %v212 = vmul.f32 %v180, 20.0
  %v213 = vmul.f32 %v181, 20.0
  %v214 = vmul.f32 %v182, 20.0
  %v215 = vmul.f32 %v183, 20.0
  %v216 = vmul.f32 %v184, 20.0
  %v217 = vmul.f32 %v185, 20.0
  %v218 = vmul.f32 %v186, 20.0
  %v219 = vmul.f32 %v187, 20.0
  %v220 = vmul.f32 %v188, 20.0
  %v221 = vmul.f32 %v189, 20.0
  %v222 = vmul.f32 %v190, 20.0
  %v223 = vmul.f32 %v191, 20.0
  %v224 = vmul.f32 %v192, 20.0
  %v225 = vmul.f32 %v193, 20.0
  %v226 = vmul.f32 %v194, 20.0
  %v227 = vmul.f32 %v195, 20.0
  %v228 = vmul.f32 %v196, 20.0
  %v229 = vmul.f32 %v197, 20.0
  %v230 = vmul.f32 %v198, 20.0
  %v231 = vmul.f32 %v199, 20.0
  %v232 = vmul.f32 %v200, 20.0
  %v233 = vmul.f32 %v201, 20.0
  %v234 = vmul.f32 %v202, 20.0
  %v235 = vmul.f32 %v203, 20.0
  %v236 = vmul.f32 %v204, 20.0
  %v237 = vmax.f32 %v205, -96.0
  %v238 = vmax.f32 %v206, -96.0
  %v239 = vmax.f32 %v207, -96.0
  %v240 = vmax.f32 %v208, -96.0
  %v241 = vmax.f32 %v209, -96.0
  %v242 = vmax.f32 %v210, -96.0
  %v243 = vmax.f32 %v211, -96.0
  %v244 = vmax.f32 %v212, -96.0
  %v245 = vmax.f32 %v213, -96.0
  %v246 = vmax.f32 %v214, -96.0
  %v247 = vmax.f32 %v215, -96.0
  %v248 = vmax.f32 %v216, -96.0
  %v249 = vmax.f32 %v217, -96.0
  %v250 = vmax.f32 %v218, -96.0
  %v251 = vmax.f32 %v219, -96.0
  %v252 = vmax.f32 %v220, -96.0
  %v253 = vmax.f32 %v221, -96.0
  %v254 = vmax.f32 %v222, -96.0
  %v255 = vmax.f32 %v223, -96.0
  %v256 = vmax.f32 %v224, -96.0
  %v257 = vmax.f32 %v225, -96.0
  %v258 = vmax.f32 %v226, -96.0
  %v259 = vmax.f32 %v227, -96.0
  %v260 = vmax.f32 %v228, -96.0
  %v261 = vmax.f32 %v229, -96.0
  %v262 = vmax.f32 %v230, -96.0
  %v263 = vmax.f32 %v231, -96.0
  %v264 = vmax.f32 %v232, -96.0
  %v265 = vmax.f32 %v233, -96.0
  %v266 = vmax.f32 %v234, -96.0
  %v267 = vmax.f32 %v235, -96.0
  %v268 = vmax.f32 %v236, -96.0
  %v269 = vstv %s12
  %v270 = vsub.f32 %v237, %v269
  %v271 = vsub.f32 %v238, %v269
  %v272 = vsub.f32 %v239, %v269
  %v273 = vsub.f32 %v240, %v269
  %v274 = vsub.f32 %v241, %v269
  %v275 = vsub.f32 %v242, %v269
  %v276 = vsub.f32 %v243, %v269
  %v277 = vsub.f32 %v244, %v269
  %v278 = vsub.f32 %v245, %v269
  %v279 = vsub.f32 %v246, %v269
  %v280 = vsub.f32 %v247, %v269
  %v281 = vsub.f32 %v248, %v269
  %v282 = vsub.f32 %v249, %v269
  %v283 = vsub.f32 %v250, %v269
  %v284 = vsub.f32 %v251, %v269
  %v285 = vsub.f32 %v252, %v269
  %v286 = vsub.f32 %v253, %v269
  %v287 = vsub.f32 %v254, %v269
  %v288 = vsub.f32 %v255, %v269
  %v289 = vsub.f32 %v256, %v269
  %v290 = vsub.f32 %v257, %v269
  %v291 = vsub.f32 %v258, %v269
  %v292 = vsub.f32 %v259, %v269
  %v293 = vsub.f32 %v260, %v269
  %v294 = vsub.f32 %v261, %v269
  %v295 = vsub.f32 %v262, %v269
  %v296 = vsub.f32 %v263, %v269
  %v297 = vsub.f32 %v264, %v269
  %v298 = vsub.f32 %v265, %v269
  %v299 = vsub.f32 %v266, %v269
  %v300 = vsub.f32 %v267, %v269
  %v301 = vsub.f32 %v268, %v269
  %v302 = vmul.f32 %v270, 2.0
  %v303 = vmul.f32 %v271, 2.0
  %v304 = vmul.f32 %v272, 2.0
  %v305 = vmul.f32 %v273, 2.0
  %v306 = vmul.f32 %v274, 2.0
  %v307 = vmul.f32 %v275, 2.0
  %v308 = vmul.f32 %v276, 2.0
  %v309 = vmul.f32 %v277, 2.0
  %v310 = vmul.f32 %v278, 2.0
  %v311 = vmul.f32 %v279, 2.0
  %v312 = vmul.f32 %v280, 2.0
  %v313 = vmul.f32 %v281, 2.0
  %v314 = vmul.f32 %v282, 2.0
  %v315 = vmul.f32 %v283, 2.0
  %v316 = vmul.f32 %v284, 2.0
  %v317 = vmul.f32 %v285, 2.0
  %v318 = vmul.f32 %v286, 2.0
  %v319 = vmul.f32 %v287, 2.0
  %v320 = vmul.f32 %v288, 2.0
  %v321 = vmul.f32 %v289, 2.0
  %v322 = vmul.f32 %v290, 2.0
  %v323 = vmul.f32 %v291, 2.0
  %v324 = vmul.f32 %v292, 2.0
  %v325 = vmul.f32 %v293, 2.0
  %v326 = vmul.f32 %v294, 2.0
  %v327 = vmul.f32 %v295, 2.0
  %v328 = vmul.f32 %v296, 2.0
  %v329 = vmul.f32 %v297, 2.0
  %v330 = vmul.f32 %v298, 2.0
  %v331 = vmul.f32 %v299, 2.0
  %v332 = vmul.f32 %v300, 2.0
  %v333 = vmul.f32 %v301, 2.0
  %vm334 = vcmp.lt.f32.partialorder %v302, -6.0
  %vm335 = vcmp.lt.f32.partialorder %v303, -6.0
  %vm336 = vcmp.lt.f32.partialorder %v304, -6.0
  %vm337 = vcmp.lt.f32.partialorder %v305, -6.0
  %vm338 = vcmp.lt.f32.partialorder %v306, -6.0
  %vm339 = vcmp.lt.f32.partialorder %v307, -6.0
  %vm340 = vcmp.lt.f32.partialorder %v308, -6.0
  %vm341 = vcmp.lt.f32.partialorder %v309, -6.0
  %vm342 = vcmp.lt.f32.partialorder %v310, -6.0
  %vm343 = vcmp.lt.f32.partialorder %v311, -6.0
  %vm344 = vcmp.lt.f32.partialorder %v312, -6.0
  %vm345 = vcmp.lt.f32.partialorder %v313, -6.0
  %vm346 = vcmp.lt.f32.partialorder %v314, -6.0
  %vm347 = vcmp.lt.f32.partialorder %v315, -6.0
  %vm348 = vcmp.lt.f32.partialorder %v316, -6.0
  %vm349 = vcmp.lt.f32.partialorder %v317, -6.0
  %vm350 = vcmp.lt.f32.partialorder %v318, -6.0
  %vm351 = vcmp.lt.f32.partialorder %v319, -6.0
  %vm352 = vcmp.lt.f32.partialorder %v320, -6.0
  %vm353 = vcmp.lt.f32.partialorder %v321, -6.0
  %vm354 = vcmp.lt.f32.partialorder %v322, -6.0
  %vm355 = vcmp.lt.f32.partialorder %v323, -6.0
  %vm356 = vcmp.lt.f32.partialorder %v324, -6.0
  %vm357 = vcmp.lt.f32.partialorder %v325, -6.0
  %vm358 = vcmp.lt.f32.partialorder %v326, -6.0
  %vm359 = vcmp.lt.f32.partialorder %v327, -6.0
  %vm360 = vcmp.lt.f32.partialorder %v328, -6.0
  %vm361 = vcmp.lt.f32.partialorder %v329, -6.0
  %vm362 = vcmp.lt.f32.partialorder %v330, -6.0
  %vm363 = vcmp.lt.f32.partialorder %v331, -6.0
  %vm364 = vcmp.lt.f32.partialorder %v332, -6.0
  %vm365 = vcmp.lt.f32.partialorder %v333, -6.0
  %vm366 = vcmp.gt.f32.partialorder %v302, 6.0
  %vm367 = vcmp.gt.f32.partialorder %v303, 6.0
  %vm368 = vcmp.gt.f32.partialorder %v304, 6.0
  %vm369 = vcmp.gt.f32.partialorder %v305, 6.0
  %vm370 = vcmp.gt.f32.partialorder %v306, 6.0
  %vm371 = vcmp.gt.f32.partialorder %v307, 6.0
  %vm372 = vcmp.gt.f32.partialorder %v308, 6.0
  %vm373 = vcmp.gt.f32.partialorder %v309, 6.0
  %vm374 = vcmp.gt.f32.partialorder %v310, 6.0
  %vm375 = vcmp.gt.f32.partialorder %v311, 6.0
  %vm376 = vcmp.gt.f32.partialorder %v312, 6.0
  %vm377 = vcmp.gt.f32.partialorder %v313, 6.0
  %vm378 = vcmp.gt.f32.partialorder %v314, 6.0
  %vm379 = vcmp.gt.f32.partialorder %v315, 6.0
  %vm380 = vcmp.gt.f32.partialorder %v316, 6.0
  %vm381 = vcmp.gt.f32.partialorder %v317, 6.0
  %vm382 = vcmp.gt.f32.partialorder %v318, 6.0
  %vm383 = vcmp.gt.f32.partialorder %v319, 6.0
  %vm384 = vcmp.gt.f32.partialorder %v320, 6.0
  %vm385 = vcmp.gt.f32.partialorder %v321, 6.0
  %vm386 = vcmp.gt.f32.partialorder %v322, 6.0
  %vm387 = vcmp.gt.f32.partialorder %v323, 6.0
  %vm388 = vcmp.gt.f32.partialorder %v324, 6.0
  %vm389 = vcmp.gt.f32.partialorder %v325, 6.0
  %vm390 = vcmp.gt.f32.partialorder %v326, 6.0
  %vm391 = vcmp.gt.f32.partialorder %v327, 6.0
  %vm392 = vcmp.gt.f32.partialorder %v328, 6.0
  %vm393 = vcmp.gt.f32.partialorder %v329, 6.0
  %vm394 = vcmp.gt.f32.partialorder %v330, 6.0
  %vm395 = vcmp.gt.f32.partialorder %v331, 6.0
  %vm396 = vcmp.gt.f32.partialorder %v332, 6.0
  %vm397 = vcmp.gt.f32.partialorder %v333, 6.0
  %v398 = vadd.f32 %v270, 3.0
  %v399 = vadd.f32 %v271, 3.0
  %v400 = vadd.f32 %v272, 3.0
  %v401 = vadd.f32 %v273, 3.0
  %v402 = vadd.f32 %v274, 3.0
  %v403 = vadd.f32 %v275, 3.0
  %v404 = vadd.f32 %v276, 3.0
  %v405 = vadd.f32 %v277, 3.0
  %v406 = vadd.f32 %v278, 3.0
  %v407 = vadd.f32 %v279, 3.0
  %v408 = vadd.f32 %v280, 3.0
  %v409 = vadd.f32 %v281, 3.0
  %v410 = vadd.f32 %v282, 3.0
  %v411 = vadd.f32 %v283, 3.0
  %v412 = vadd.f32 %v284, 3.0
  %v413 = vadd.f32 %v285, 3.0
  %v414 = vadd.f32 %v286, 3.0
  %v415 = vadd.f32 %v287, 3.0
  %v416 = vadd.f32 %v288, 3.0
  %v417 = vadd.f32 %v289, 3.0
  %v418 = vadd.f32 %v290, 3.0
  %v419 = vadd.f32 %v291, 3.0
  %v420 = vadd.f32 %v292, 3.0
  %v421 = vadd.f32 %v293, 3.0
  %v422 = vadd.f32 %v294, 3.0
  %v423 = vadd.f32 %v295, 3.0
  %v424 = vadd.f32 %v296, 3.0
  %v425 = vadd.f32 %v297, 3.0
  %v426 = vadd.f32 %v298, 3.0
  %v427 = vadd.f32 %v299, 3.0
  %v428 = vadd.f32 %v300, 3.0
  %v429 = vadd.f32 %v301, 3.0
  %v430 = vmul.f32 %v398, %v398
  %v431 = vmul.f32 %v399, %v399
  %v432 = vmul.f32 %v400, %v400
  %v433 = vmul.f32 %v401, %v401
  %v434 = vmul.f32 %v402, %v402
  %v435 = vmul.f32 %v403, %v403
  %v436 = vmul.f32 %v404, %v404
  %v437 = vmul.f32 %v405, %v405
  %v438 = vmul.f32 %v406, %v406
  %v439 = vmul.f32 %v407, %v407
  %v440 = vmul.f32 %v408, %v408
  %v441 = vmul.f32 %v409, %v409
  %v442 = vmul.f32 %v410, %v410
  %v443 = vmul.f32 %v411, %v411
  %v444 = vmul.f32 %v412, %v412
  %v445 = vmul.f32 %v413, %v413
  %v446 = vmul.f32 %v414, %v414
  %v447 = vmul.f32 %v415, %v415
  %v448 = vmul.f32 %v416, %v416
  %v449 = vmul.f32 %v417, %v417
  %v450 = vmul.f32 %v418, %v418
  %v451 = vmul.f32 %v419, %v419
  %v452 = vmul.f32 %v420, %v420
  %v453 = vmul.f32 %v421, %v421
  %v454 = vmul.f32 %v422, %v422
  %v455 = vmul.f32 %v423, %v423
  %v456 = vmul.f32 %v424, %v424
  %v457 = vmul.f32 %v425, %v425
  %v458 = vmul.f32 %v426, %v426
  %v459 = vmul.f32 %v427, %v427
  %v460 = vmul.f32 %v428, %v428
  %v461 = vmul.f32 %v429, %v429
  %v462 = vmul.f32 %v430, -0.6666667
  %v463 = vmul.f32 %v431, -0.6666667
  %v464 = vmul.f32 %v432, -0.6666667
  %v465 = vmul.f32 %v433, -0.6666667
  %v466 = vmul.f32 %v434, -0.6666667
  %v467 = vmul.f32 %v435, -0.6666667
  %v468 = vmul.f32 %v436, -0.6666667
  %v469 = vmul.f32 %v437, -0.6666667
  %v470 = vmul.f32 %v438, -0.6666667
  %v471 = vmul.f32 %v439, -0.6666667
  %v472 = vmul.f32 %v440, -0.6666667
  %v473 = vmul.f32 %v441, -0.6666667
  %v474 = vmul.f32 %v442, -0.6666667
  %v475 = vmul.f32 %v443, -0.6666667
  %v476 = vmul.f32 %v444, -0.6666667
  %v477 = vmul.f32 %v445, -0.6666667
  %v478 = vmul.f32 %v446, -0.6666667
  %v479 = vmul.f32 %v447, -0.6666667
  %v480 = vmul.f32 %v448, -0.6666667
  %v481 = vmul.f32 %v449, -0.6666667
  %v482 = vmul.f32 %v450, -0.6666667
  %v483 = vmul.f32 %v451, -0.6666667
  %v484 = vmul.f32 %v452, -0.6666667
  %v485 = vmul.f32 %v453, -0.6666667
  %v486 = vmul.f32 %v454, -0.6666667
  %v487 = vmul.f32 %v455, -0.6666667
  %v488 = vmul.f32 %v456, -0.6666667
  %v489 = vmul.f32 %v457, -0.6666667
  %v490 = vmul.f32 %v458, -0.6666667
  %v491 = vmul.f32 %v459, -0.6666667
  %v492 = vmul.f32 %v460, -0.6666667
  %v493 = vmul.f32 %v461, -0.6666667
  %v494 = vrcp.pop 12.0
  %v495 = vmul.f32 %v462, %v494
  %v496 = vmul.f32 %v463, %v494
  %v497 = vmul.f32 %v464, %v494
  %v498 = vmul.f32 %v465, %v494
  %v499 = vmul.f32 %v466, %v494
  %v500 = vmul.f32 %v467, %v494
  %v501 = vmul.f32 %v468, %v494
  %v502 = vmul.f32 %v469, %v494
  %v503 = vmul.f32 %v470, %v494
  %v504 = vmul.f32 %v471, %v494
  %v505 = vmul.f32 %v472, %v494
  %v506 = vmul.f32 %v473, %v494
  %v507 = vmul.f32 %v474, %v494
  %v508 = vmul.f32 %v475, %v494
  %v509 = vmul.f32 %v476, %v494
  %v510 = vmul.f32 %v477, %v494
  %v511 = vmul.f32 %v478, %v494
  %v512 = vmul.f32 %v479, %v494
  %v513 = vmul.f32 %v480, %v494
  %v514 = vmul.f32 %v481, %v494
  %v515 = vmul.f32 %v482, %v494
  %v516 = vmul.f32 %v483, %v494
  %v517 = vmul.f32 %v484, %v494
  %v518 = vmul.f32 %v485, %v494
  %v519 = vmul.f32 %v486, %v494
  %v520 = vmul.f32 %v487, %v494
  %v521 = vmul.f32 %v488, %v494
  %v522 = vmul.f32 %v489, %v494
  %v523 = vmul.f32 %v490, %v494
  %v524 = vmul.f32 %v491, %v494
  %v525 = vmul.f32 %v492, %v494
  %v526 = vmul.f32 %v493, %v494
  %v527 = vadd.f32 %v237, %v495
  %v528 = vadd.f32 %v238, %v496
  %v529 = vadd.f32 %v239, %v497
  %v530 = vadd.f32 %v240, %v498
  %v531 = vadd.f32 %v241, %v499
  %v532 = vadd.f32 %v242, %v500
  %v533 = vadd.f32 %v243, %v501
  %v534 = vadd.f32 %v244, %v502
  %v535 = vadd.f32 %v245, %v503
  %v536 = vadd.f32 %v246, %v504
  %v537 = vadd.f32 %v247, %v505
  %v538 = vadd.f32 %v248, %v506
  %v539 = vadd.f32 %v249, %v507
  %v540 = vadd.f32 %v250, %v508
  %v541 = vadd.f32 %v251, %v509
  %v542 = vadd.f32 %v252, %v510
  %v543 = vadd.f32 %v253, %v511
  %v544 = vadd.f32 %v254, %v512
  %v545 = vadd.f32 %v255, %v513
  %v546 = vadd.f32 %v256, %v514
  %v547 = vadd.f32 %v257, %v515
  %v548 = vadd.f32 %v258, %v516
  %v549 = vadd.f32 %v259, %v517
  %v550 = vadd.f32 %v260, %v518
  %v551 = vadd.f32 %v261, %v519
  %v552 = vadd.f32 %v262, %v520
  %v553 = vadd.f32 %v263, %v521
  %v554 = vadd.f32 %v264, %v522
  %v555 = vadd.f32 %v265, %v523
  %v556 = vadd.f32 %v266, %v524
  %v557 = vadd.f32 %v267, %v525
  %v558 = vadd.f32 %v268, %v526
  %v559 = vrcp.pop 3.0
  %v560 = vmul.f32 %v270, %v559
  %v561 = vmul.f32 %v271, %v559
  %v562 = vmul.f32 %v272, %v559
  %v563 = vmul.f32 %v273, %v559
  %v564 = vmul.f32 %v274, %v559
  %v565 = vmul.f32 %v275, %v559
  %v566 = vmul.f32 %v276, %v559
  %v567 = vmul.f32 %v277, %v559
  %v568 = vmul.f32 %v278, %v559
  %v569 = vmul.f32 %v279, %v559
  %v570 = vmul.f32 %v280, %v559
  %v571 = vmul.f32 %v281, %v559
  %v572 = vmul.f32 %v282, %v559
  %v573 = vmul.f32 %v283, %v559
  %v574 = vmul.f32 %v284, %v559
  %v575 = vmul.f32 %v285, %v559
  %v576 = vmul.f32 %v286, %v559
  %v577 = vmul.f32 %v287, %v559
  %v578 = vmul.f32 %v288, %v559
  %v579 = vmul.f32 %v289, %v559
  %v580 = vmul.f32 %v290, %v559
  %v581 = vmul.f32 %v291, %v559
  %v582 = vmul.f32 %v292, %v559
  %v583 = vmul.f32 %v293, %v559
  %v584 = vmul.f32 %v294, %v559
  %v585 = vmul.f32 %v295, %v559
  %v586 = vmul.f32 %v296, %v559
  %v587 = vmul.f32 %v297, %v559
  %v588 = vmul.f32 %v298, %v559
  %v589 = vmul.f32 %v299, %v559
  %v590 = vmul.f32 %v300, %v559
  %v591 = vmul.f32 %v301, %v559
  %v592 = vadd.f32 %v269, %v560
  %v593 = vadd.f32 %v269, %v561
  %v594 = vadd.f32 %v269, %v562
  %v595 = vadd.f32 %v269, %v563
  %v596 = vadd.f32 %v269, %v564
  %v597 = vadd.f32 %v269, %v565
  %v598 = vadd.f32 %v269, %v566
  %v599 = vadd.f32 %v269, %v567
  %v600 = vadd.f32 %v269, %v568
  %v601 = vadd.f32 %v269, %v569
  %v602 = vadd.f32 %v269, %v570
  %v603 = vadd.f32 %v269, %v571
  %v604 = vadd.f32 %v269, %v572
  %v605 = vadd.f32 %v269, %v573
  %v606 = vadd.f32 %v269, %v574
  %v607 = vadd.f32 %v269, %v575
  %v608 = vadd.f32 %v269, %v576
  %v609 = vadd.f32 %v269, %v577
  %v610 = vadd.f32 %v269, %v578
  %v611 = vadd.f32 %v269, %v579
  %v612 = vadd.f32 %v269, %v580
  %v613 = vadd.f32 %v269, %v581
  %v614 = vadd.f32 %v269, %v582
  %v615 = vadd.f32 %v269, %v583
  %v616 = vadd.f32 %v269, %v584
  %v617 = vadd.f32 %v269, %v585
  %v618 = vadd.f32 %v269, %v586
  %v619 = vadd.f32 %v269, %v587
  %v620 = vadd.f32 %v269, %v588
  %v621 = vadd.f32 %v269, %v589
  %v622 = vadd.f32 %v269, %v590
  %v623 = vadd.f32 %v269, %v591
  %v624 = vsel %vm334, %v237, %v527
  %v625 = vsel %vm335, %v238, %v528
  %v626 = vsel %vm336, %v239, %v529
  %v627 = vsel %vm337, %v240, %v530
  %v628 = vsel %vm338, %v241, %v531
  %v629 = vsel %vm339, %v242, %v532
  %v630 = vsel %vm340, %v243, %v533
  %v631 = vsel %vm341, %v244, %v534
  %v632 = vsel %vm342, %v245, %v535
  %v633 = vsel %vm343, %v246, %v536
  %v634 = vsel %vm344, %v247, %v537
  %v635 = vsel %vm345, %v248, %v538
  %v636 = vsel %vm346, %v249, %v539
  %v637 = vsel %vm347, %v250, %v540
  %v638 = vsel %vm348, %v251, %v541
  %v639 = vsel %vm349, %v252, %v542
  %v640 = vsel %vm350, %v253, %v543
  %v641 = vsel %vm351, %v254, %v544
  %v642 = vsel %vm352, %v255, %v545
  %v643 = vsel %vm353, %v256, %v546
  %v644 = vsel %vm354, %v257, %v547
  %v645 = vsel %vm355, %v258, %v548
  %v646 = vsel %vm356, %v259, %v549
  %v647 = vsel %vm357, %v260, %v550
  %v648 = vsel %vm358, %v261, %v551
  %v649 = vsel %vm359, %v262, %v552
  %v650 = vsel %vm360, %v263, %v553
  %v651 = vsel %vm361, %v264, %v554
  %v652 = vsel %vm362, %v265, %v555
  %v653 = vsel %vm363, %v266, %v556
  %v654 = vsel %vm364, %v267, %v557
  %v655 = vsel %vm365, %v268, %v558
  %v656 = vsel %vm366, %v592, %v624
  %v657 = vsel %vm367, %v593, %v625
  %v658 = vsel %vm368, %v594, %v626
  %v659 = vsel %vm369, %v595, %v627
  %v660 = vsel %vm370, %v596, %v628
  %v661 = vsel %vm371, %v597, %v629
  %v662 = vsel %vm372, %v598, %v630
  %v663 = vsel %vm373, %v599, %v631
  %v664 = vsel %vm374, %v600, %v632
  %v665 = vsel %vm375, %v601, %v633
  %v666 = vsel %vm376, %v602, %v634
  %v667 = vsel %vm377, %v603, %v635
  %v668 = vsel %vm378, %v604, %v636
  %v669 = vsel %vm379, %v605, %v637
  %v670 = vsel %vm380, %v606, %v638
  %v671 = vsel %vm381, %v607, %v639
  %v672 = vsel %vm382, %v608, %v640
  %v673 = vsel %vm383, %v609, %v641
  %v674 = vsel %vm384, %v610, %v642
  %v675 = vsel %vm385, %v611, %v643
  %v676 = vsel %vm386, %v612, %v644
  %v677 = vsel %vm387, %v613, %v645
  %v678 = vsel %vm388, %v614, %v646
  %v679 = vsel %vm389, %v615, %v647
  %v680 = vsel %vm390, %v616, %v648
  %v681 = vsel %vm391, %v617, %v649
  %v682 = vsel %vm392, %v618, %v650
  %v683 = vsel %vm393, %v619, %v651
  %v684 = vsel %vm394, %v620, %v652
  %v685 = vsel %vm395, %v621, %v653
  %v686 = vsel %vm396, %v622, %v654
  %v687 = vsel %vm397, %v623, %v655
  %v688 = vsub.f32 %v237, %v656
  %v689 = vsub.f32 %v238, %v657
  %v690 = vsub.f32 %v239, %v658
  %v691 = vsub.f32 %v240, %v659
  %v692 = vsub.f32 %v241, %v660
  %v693 = vsub.f32 %v242, %v661
  %v694 = vsub.f32 %v243, %v662
  %v695 = vsub.f32 %v244, %v663
  %v696 = vsub.f32 %v245, %v664
  %v697 = vsub.f32 %v246, %v665
  %v698 = vsub.f32 %v247, %v666
  %v699 = vsub.f32 %v248, %v667
  %v700 = vsub.f32 %v249, %v668
  %v701 = vsub.f32 %v250, %v669
  %v702 = vsub.f32 %v251, %v670
  %v703 = vsub.f32 %v252, %v671
  %v704 = vsub.f32 %v253, %v672
  %v705 = vsub.f32 %v254, %v673
  %v706 = vsub.f32 %v255, %v674
  %v707 = vsub.f32 %v256, %v675
  %v708 = vsub.f32 %v257, %v676
  %v709 = vsub.f32 %v258, %v677
  %v710 = vsub.f32 %v259, %v678
  %v711 = vsub.f32 %v260, %v679
  %v712 = vsub.f32 %v261, %v680
  %v713 = vsub.f32 %v262, %v681
  %v714 = vsub.f32 %v263, %v682
  %v715 = vsub.f32 %v264, %v683
  %v716 = vsub.f32 %v265, %v684
  %v717 = vsub.f32 %v266, %v685
  %v718 = vsub.f32 %v267, %v686
  %v719 = vsub.f32 %v268, %v687
  %720 = vst [vmem:[%s2] sm:$0xff] %v688
  %721 = vst [vmem:[%s2 + $0x8] sm:$0xff] %v689
  %722 = vst [vmem:[%s2 + $0x10] sm:$0xff] %v690
  %723 = vst [vmem:[%s2 + $0x18] sm:$0xff] %v691
  %724 = vst [vmem:[%s2 + $0x20] sm:$0xff] %v692
  %725 = vst [vmem:[%s2 + $0x28] sm:$0xff] %v693
  %726 = vst [vmem:[%s2 + $0x30] sm:$0xff] %v694
  %727 = vst [vmem:[%s2 + $0x38] sm:$0xff] %v695
  %728 = vst [vmem:[%s2 + $0x40] sm:$0xff] %v696
  %729 = vst [vmem:[%s2 + $0x48] sm:$0xff] %v697
  %730 = vst [vmem:[%s2 + $0x50] sm:$0xff] %v698
  %731 = vst [vmem:[%s2 + $0x58] sm:$0xff] %v699
  %732 = vst [vmem:[%s2 + $0x60] sm:$0xff] %v700
  %733 = vst [vmem:[%s2 + $0x68] sm:$0xff] %v701
  %734 = vst [vmem:[%s2 + $0x70] sm:$0xff] %v702
  %735 = vst [vmem:[%s2 + $0x78] sm:$0xff] %v703
  %736 = vst [vmem:[%s2 + $0x80] sm:$0xff] %v704
  %737 = vst [vmem:[%s2 + $0x88] sm:$0xff] %v705
  %738 = vst [vmem:[%s2 + $0x90] sm:$0xff] %v706
  %739 = vst [vmem:[%s2 + $0x98] sm:$0xff] %v707
  %740 = vst [vmem:[%s2 + $0xa0] sm:$0xff] %v708
  %741 = vst [vmem:[%s2 + $0xa8] sm:$0xff] %v709
  %742 = vst [vmem:[%s2 + $0xb0] sm:$0xff] %v710
  %743 = vst [vmem:[%s2 + $0xb8] sm:$0xff] %v711
  %744 = vst [vmem:[%s2 + $0xc0] sm:$0xff] %v712
  %745 = vst [vmem:[%s2 + $0xc8] sm:$0xff] %v713
  %746 = vst [vmem:[%s2 + $0xd0] sm:$0xff] %v714
  %747 = vst [vmem:[%s2 + $0xd8] sm:$0xff] %v715
  %748 = vst [vmem:[%s2 + $0xe0] sm:$0xff] %v716
  %749 = vst [vmem:[%s2 + $0xe8] sm:$0xff] %v717
  %750 = vst [vmem:[%s2 + $0xf0] sm:$0xff] %v718
  %751 = vst [vmem:[%s2 + $0xf8] sm:$0xff] %v719
  // Predicated region
  $region10: #{body.30} parent=0 // pred_check
    _
  $region11: #{body.30} parent=0 // pred_check_branch
    %753 = sbr.rel (0) target = $region13
  $region12: #{body.30} parent=0 // pred_region
    _
  $region13: #{body.30} parent=0 // pred_fallthru
    _
  // Predicated region
  $region14: #{body.30} parent=0 // pred_check
    _
  $region15: #{body.30} parent=0 // pred_check_branch
    %755 = sbr.rel (0) target = $region17
  $region16: #{body.30} parent=0 // pred_region
    _
  $region17: #{body.30} parent=0 // pred_fallthru
    _

// kernel: custom-call.4
$region0: #{custom-call.4}
  %s0 = inlined_call_operand.vmem [shape: f32[1000,8], index: 0, kind: output, shape index: {}]

// kernel: body.31
$region0: #{body.31}
  #allocation0 [shape = 'u32[]', space=smem, size = 0x4, offset = 0x4, fixed_abs, tag = 'smem constant byte address 0x4 - core index']
  #allocation1 [shape = 'u32[144,128]{1,0:T(1,128)}', space=vmem, size = 0x12000, scoped, tag = 'internal scratch']
  %s0 = inlined_call_operand.vmem [shape: f32[64,512], index: 0, kind: input, shape index: {}]
  %s1 = inlined_call_operand.vmem [shape: f32[64,512], index: 1, kind: input, shape index: {}]
  %s2 = inlined_call_operand.vmem [shape: f32[64,512], index: 2, kind: output, shape index: {}]
  %s3 = sld [smem:[#allocation0]]
  $region18: #{body.31} parent=0
    _
  %s5 = ssub.s32 1, %s3
  %s6 = scalar_select 0, %s5, %s3
  // Predicated region
  $region2: #{body.31} parent=0 // pred_check
    _
  $region3: #{body.31} parent=0 // pred_check_branch
    %8 = sbr.rel (0) target = $region5
  $region4: #{body.31} parent=0 // pred_region
    _
  $region5: #{body.31} parent=0 // pred_fallthru
    _
  // Predicated region
  $region6: #{body.31} parent=0 // pred_check
    _
  $region7: #{body.31} parent=0 // pred_check_branch
    %10 = sbr.rel (0) target = $region9
  $region8: #{body.31} parent=0 // pred_region
    _
  $region9: #{body.31} parent=0 // pred_fallthru
    _
  %v11 = vld [vmem:[%s0] sm:$0xff]
  %v12 = vld [vmem:[%s0 + $0x8] sm:$0xff]
  %v13 = vld [vmem:[%s0 + $0x10] sm:$0xff]
  %v14 = vld [vmem:[%s0 + $0x18] sm:$0xff]
  %v15 = vld [vmem:[%s0 + $0x20] sm:$0xff]
  %v16 = vld [vmem:[%s0 + $0x28] sm:$0xff]
  %v17 = vld [vmem:[%s0 + $0x30] sm:$0xff]
  %v18 = vld [vmem:[%s0 + $0x38] sm:$0xff]
  %v19 = vld [vmem:[%s0 + $0x40] sm:$0xff]
  %v20 = vld [vmem:[%s0 + $0x48] sm:$0xff]
  %v21 = vld [vmem:[%s0 + $0x50] sm:$0xff]
  %v22 = vld [vmem:[%s0 + $0x58] sm:$0xff]
  %v23 = vld [vmem:[%s0 + $0x60] sm:$0xff]
  %v24 = vld [vmem:[%s0 + $0x68] sm:$0xff]
  %v25 = vld [vmem:[%s0 + $0x70] sm:$0xff]
  %v26 = vld [vmem:[%s0 + $0x78] sm:$0xff]
  %v27 = vld [vmem:[%s0 + $0x80] sm:$0xff]
  %v28 = vld [vmem:[%s0 + $0x88] sm:$0xff]
  %v29 = vld [vmem:[%s0 + $0x90] sm:$0xff]
  %v30 = vld [vmem:[%s0 + $0x98] sm:$0xff]
  %v31 = vld [vmem:[%s0 + $0xa0] sm:$0xff]
  %v32 = vld [vmem:[%s0 + $0xa8] sm:$0xff]
  %v33 = vld [vmem:[%s0 + $0xb0] sm:$0xff]
  %v34 = vld [vmem:[%s0 + $0xb8] sm:$0xff]
  %v35 = vld [vmem:[%s0 + $0xc0] sm:$0xff]
  %v36 = vld [vmem:[%s0 + $0xc8] sm:$0xff]
  %v37 = vld [vmem:[%s0 + $0xd0] sm:$0xff]
  %v38 = vld [vmem:[%s0 + $0xd8] sm:$0xff]
  %v39 = vld [vmem:[%s0 + $0xe0] sm:$0xff]
  %v40 = vld [vmem:[%s0 + $0xe8] sm:$0xff]
  %v41 = vld [vmem:[%s0 + $0xf0] sm:$0xff]
  %v42 = vld [vmem:[%s0 + $0xf8] sm:$0xff]
  %v43 = vld [vmem:[%s1] sm:$0xff]
  %v44 = vld [vmem:[%s1 + $0x8] sm:$0xff]
  %v45 = vld [vmem:[%s1 + $0x10] sm:$0xff]
  %v46 = vld [vmem:[%s1 + $0x18] sm:$0xff]
  %v47 = vld [vmem:[%s1 + $0x20] sm:$0xff]
  %v48 = vld [vmem:[%s1 + $0x28] sm:$0xff]
  %v49 = vld [vmem:[%s1 + $0x30] sm:$0xff]
  %v50 = vld [vmem:[%s1 + $0x38] sm:$0xff]
  %v51 = vld [vmem:[%s1 + $0x40] sm:$0xff]
  %v52 = vld [vmem:[%s1 + $0x48] sm:$0xff]
  %v53 = vld [vmem:[%s1 + $0x50] sm:$0xff]
  %v54 = vld [vmem:[%s1 + $0x58] sm:$0xff]
  %v55 = vld [vmem:[%s1 + $0x60] sm:$0xff]
  %v56 = vld [vmem:[%s1 + $0x68] sm:$0xff]
  %v57 = vld [vmem:[%s1 + $0x70] sm:$0xff]
  %v58 = vld [vmem:[%s1 + $0x78] sm:$0xff]
  %v59 = vld [vmem:[%s1 + $0x80] sm:$0xff]
  %v60 = vld [vmem:[%s1 + $0x88] sm:$0xff]
  %v61 = vld [vmem:[%s1 + $0x90] sm:$0xff]
  %v62 = vld [vmem:[%s1 + $0x98] sm:$0xff]
  %v63 = vld [vmem:[%s1 + $0xa0] sm:$0xff]
  %v64 = vld [vmem:[%s1 + $0xa8] sm:$0xff]
  %v65 = vld [vmem:[%s1 + $0xb0] sm:$0xff]
  %v66 = vld [vmem:[%s1 + $0xb8] sm:$0xff]
  %v67 = vld [vmem:[%s1 + $0xc0] sm:$0xff]
  %v68 = vld [vmem:[%s1 + $0xc8] sm:$0xff]
  %v69 = vld [vmem:[%s1 + $0xd0] sm:$0xff]
  %v70 = vld [vmem:[%s1 + $0xd8] sm:$0xff]
  %v71 = vld [vmem:[%s1 + $0xe0] sm:$0xff]
  %v72 = vld [vmem:[%s1 + $0xe8] sm:$0xff]
  %v73 = vld [vmem:[%s1 + $0xf0] sm:$0xff]
  %v74 = vld [vmem:[%s1 + $0xf8] sm:$0xff]
  %v75 = vsub.f32 0.0, %v43
  %v76 = vsub.f32 0.0, %v44
  %v77 = vsub.f32 0.0, %v45
  %v78 = vsub.f32 0.0, %v46
  %v79 = vsub.f32 0.0, %v47
  %v80 = vsub.f32 0.0, %v48
  %v81 = vsub.f32 0.0, %v49
  %v82 = vsub.f32 0.0, %v50
  %v83 = vsub.f32 0.0, %v51
  %v84 = vsub.f32 0.0, %v52
  %v85 = vsub.f32 0.0, %v53
  %v86 = vsub.f32 0.0, %v54
  %v87 = vsub.f32 0.0, %v55
  %v88 = vsub.f32 0.0, %v56
  %v89 = vsub.f32 0.0, %v57
  %v90 = vsub.f32 0.0, %v58
  %v91 = vsub.f32 0.0, %v59
  %v92 = vsub.f32 0.0, %v60
  %v93 = vsub.f32 0.0, %v61
  %v94 = vsub.f32 0.0, %v62
  %v95 = vsub.f32 0.0, %v63
  %v96 = vsub.f32 0.0, %v64
  %v97 = vsub.f32 0.0, %v65
  %v98 = vsub.f32 0.0, %v66
  %v99 = vsub.f32 0.0, %v67
  %v100 = vsub.f32 0.0, %v68
  %v101 = vsub.f32 0.0, %v69
  %v102 = vsub.f32 0.0, %v70
  %v103 = vsub.f32 0.0, %v71
  %v104 = vsub.f32 0.0, %v72
  %v105 = vsub.f32 0.0, %v73
  %v106 = vsub.f32 0.0, %v74
  %v107 = vmul.f32 %v75, 0.115129255
  %v108 = vmul.f32 %v76, 0.115129255
  %v109 = vmul.f32 %v77, 0.115129255
  %v110 = vmul.f32 %v78, 0.115129255
  %v111 = vmul.f32 %v79, 0.115129255
  %v112 = vmul.f32 %v80, 0.115129255
  %v113 = vmul.f32 %v81, 0.115129255
  %v114 = vmul.f32 %v82, 0.115129255
  %v115 = vmul.f32 %v83, 0.115129255
  %v116 = vmul.f32 %v84, 0.115129255
  %v117 = vmul.f32 %v85, 0.115129255
  %v118 = vmul.f32 %v86, 0.115129255
  %v119 = vmul.f32 %v87, 0.115129255
  %v120 = vmul.f32 %v88, 0.115129255
  %v121 = vmul.f32 %v89, 0.115129255
  %v122 = vmul.f32 %v90, 0.115129255
  %v123 = vmul.f32 %v91, 0.115129255
  %v124 = vmul.f32 %v92, 0.115129255
  %v125 = vmul.f32 %v93, 0.115129255
  %v126 = vmul.f32 %v94, 0.115129255
  %v127 = vmul.f32 %v95, 0.115129255
  %v128 = vmul.f32 %v96, 0.115129255
  %v129 = vmul.f32 %v97, 0.115129255
  %v130 = vmul.f32 %v98, 0.115129255
  %v131 = vmul.f32 %v99, 0.115129255
  %v132 = vmul.f32 %v100, 0.115129255
  %v133 = vmul.f32 %v101, 0.115129255
  %v134 = vmul.f32 %v102, 0.115129255
  %v135 = vmul.f32 %v103, 0.115129255
  %v136 = vmul.f32 %v104, 0.115129255
  %v137 = vmul.f32 %v105, 0.115129255
  %v138 = vmul.f32 %v106, 0.115129255
  %v139 = vmul.f32 %v107, 1.442695
  %v140 = vpow.pop %v139
  %v141 = vmul.f32 %v108, 1.442695
  %v142 = vpow.pop %v141
  %v143 = vmul.f32 %v109, 1.442695
  %v144 = vpow.pop %v143
  %v145 = vmul.f32 %v110, 1.442695
  %v146 = vpow.pop %v145
  %v147 = vmul.f32 %v111, 1.442695
  %v148 = vpow.pop %v147
  %v149 = vmul.f32 %v112, 1.442695
  %v150 = vpow.pop %v149
  %v151 = vmul.f32 %v113, 1.442695
  %v152 = vpow.pop %v151
  %v153 = vmul.f32 %v114, 1.442695
  %v154 = vpow.pop %v153
  %v155 = vmul.f32 %v115, 1.442695
  %v156 = vpow.pop %v155
  %v157 = vmul.f32 %v116, 1.442695
  %v158 = vpow.pop %v157
  %v159 = vmul.f32 %v117, 1.442695
  %v160 = vpow.pop %v159
  %v161 = vmul.f32 %v118, 1.442695
  %v162 = vpow.pop %v161
  %v163 = vmul.f32 %v119, 1.442695
  %v164 = vpow.pop %v163
  %v165 = vmul.f32 %v120, 1.442695
  %v166 = vpow.pop %v165
  %v167 = vmul.f32 %v121, 1.442695
  %v168 = vpow.pop %v167
  %v169 = vmul.f32 %v122, 1.442695
  %v170 = vpow.pop %v169
  %v171 = vmul.f32 %v123, 1.442695
  %v172 = vpow.pop %v171
  %v173 = vmul.f32 %v124, 1.442695
  %v174 = vpow.pop %v173
  %v175 = vmul.f32 %v125, 1.442695
  %v176 = vpow.pop %v175
  %v177 = vmul.f32 %v126, 1.442695
  %v178 = vpow.pop %v177
  %v179 = vmul.f32 %v127, 1.442695
  %v180 = vpow.pop %v179
  %v181 = vmul.f32 %v128, 1.442695
  %v182 = vpow.pop %v181
  %v183 = vmul.f32 %v129, 1.442695
  %v184 = vpow.pop %v183
  %v185 = vmul.f32 %v130, 1.442695
  %v186 = vpow.pop %v185
  %v187 = vmul.f32 %v131, 1.442695
  %v188 = vpow.pop %v187
  %v189 = vmul.f32 %v132, 1.442695
  %v190 = vpow.pop %v189
  %v191 = vmul.f32 %v133, 1.442695
  %v192 = vpow.pop %v191
  %v193 = vmul.f32 %v134, 1.442695
  %v194 = vpow.pop %v193
  %v195 = vmul.f32 %v135, 1.442695
  %v196 = vpow.pop %v195
  %v197 = vmul.f32 %v136, 1.442695
  %v198 = vpow.pop %v197
  %v199 = vmul.f32 %v137, 1.442695
  %v200 = vpow.pop %v199
  %v201 = vmul.f32 %v138, 1.442695
  %v202 = vpow.pop %v201
  %v203 = vmul.f32 %v11, %v140
  %v204 = vmul.f32 %v12, %v142
  %v205 = vmul.f32 %v13, %v144
  %v206 = vmul.f32 %v14, %v146
  %v207 = vmul.f32 %v15, %v148
  %v208 = vmul.f32 %v16, %v150
  %v209 = vmul.f32 %v17, %v152
  %v210 = vmul.f32 %v18, %v154
  %v211 = vmul.f32 %v19, %v156
  %v212 = vmul.f32 %v20, %v158
  %v213 = vmul.f32 %v21, %v160
  %v214 = vmul.f32 %v22, %v162
  %v215 = vmul.f32 %v23, %v164
  %v216 = vmul.f32 %v24, %v166
  %v217 = vmul.f32 %v25, %v168
  %v218 = vmul.f32 %v26, %v170
  %v219 = vmul.f32 %v27, %v172
  %v220 = vmul.f32 %v28, %v174
  %v221 = vmul.f32 %v29, %v176
  %v222 = vmul.f32 %v30, %v178
  %v223 = vmul.f32 %v31, %v180
  %v224 = vmul.f32 %v32, %v182
  %v225 = vmul.f32 %v33, %v184
  %v226 = vmul.f32 %v34, %v186
  %v227 = vmul.f32 %v35, %v188
  %v228 = vmul.f32 %v36, %v190
  %v229 = vmul.f32 %v37, %v192
  %v230 = vmul.f32 %v38, %v194
  %v231 = vmul.f32 %v39, %v196
  %v232 = vmul.f32 %v40, %v198
  %v233 = vmul.f32 %v41, %v200
  %v234 = vmul.f32 %v42, %v202
  %235 = vst [vmem:[%s2] sm:$0xff] %v203
  %236 = vst [vmem:[%s2 + $0x8] sm:$0xff] %v204
  %237 = vst [vmem:[%s2 + $0x10] sm:$0xff] %v205
  %238 = vst [vmem:[%s2 + $0x18] sm:$0xff] %v206
  %239 = vst [vmem:[%s2 + $0x20] sm:$0xff] %v207
  %240 = vst [vmem:[%s2 + $0x28] sm:$0xff] %v208
  %241 = vst [vmem:[%s2 + $0x30] sm:$0xff] %v209
  %242 = vst [vmem:[%s2 + $0x38] sm:$0xff] %v210
  %243 = vst [vmem:[%s2 + $0x40] sm:$0xff] %v211
  %244 = vst [vmem:[%s2 + $0x48] sm:$0xff] %v212
  %245 = vst [vmem:[%s2 + $0x50] sm:$0xff] %v213
  %246 = vst [vmem:[%s2 + $0x58] sm:$0xff] %v214
  %247 = vst [vmem:[%s2 + $0x60] sm:$0xff] %v215
  %248 = vst [vmem:[%s2 + $0x68] sm:$0xff] %v216
  %249 = vst [vmem:[%s2 + $0x70] sm:$0xff] %v217
  %250 = vst [vmem:[%s2 + $0x78] sm:$0xff] %v218
  %251 = vst [vmem:[%s2 + $0x80] sm:$0xff] %v219
  %252 = vst [vmem:[%s2 + $0x88] sm:$0xff] %v220
  %253 = vst [vmem:[%s2 + $0x90] sm:$0xff] %v221
  %254 = vst [vmem:[%s2 + $0x98] sm:$0xff] %v222
  %255 = vst [vmem:[%s2 + $0xa0] sm:$0xff] %v223
  %256 = vst [vmem:[%s2 + $0xa8] sm:$0xff] %v224
  %257 = vst [vmem:[%s2 + $0xb0] sm:$0xff] %v225
  %258 = vst [vmem:[%s2 + $0xb8] sm:$0xff] %v226
  %259 = vst [vmem:[%s2 + $0xc0] sm:$0xff] %v227
  %260 = vst [vmem:[%s2 + $0xc8] sm:$0xff] %v228
  %261 = vst [vmem:[%s2 + $0xd0] sm:$0xff] %v229
  %262 = vst [vmem:[%s2 + $0xd8] sm:$0xff] %v230
  %263 = vst [vmem:[%s2 + $0xe0] sm:$0xff] %v231
  %264 = vst [vmem:[%s2 + $0xe8] sm:$0xff] %v232
  %265 = vst [vmem:[%s2 + $0xf0] sm:$0xff] %v233
  %266 = vst [vmem:[%s2 + $0xf8] sm:$0xff] %v234
  // Predicated region
  $region10: #{body.31} parent=0 // pred_check
    _
  $region11: #{body.31} parent=0 // pred_check_branch
    %268 = sbr.rel (0) target = $region13
  $region12: #{body.31} parent=0 // pred_region
    _
  $region13: #{body.31} parent=0 // pred_fallthru
    _
  // Predicated region
  $region14: #{body.31} parent=0 // pred_check
    _
  $region15: #{body.31} parent=0 // pred_check_branch
    %270 = sbr.rel (0) target = $region17
  $region16: #{body.31} parent=0 // pred_region
    _
  $region17: #{body.31} parent=0 // pred_fallthru
    _

</llo_original>
